<compile_context>
chip_gen: v7x
topology: tpu7x:2x2x1
jax: 0.10.0
libtpu: 0.0.40
codegen_flags: <defaults>
</compile_context>

<pallas_src>
import functools
import math

import jax
import jax.numpy as jnp
from jax.experimental import pallas as pl
from jax.experimental.pallas import tpu as pltpu


# --------------------------- linear: y = x @ W^T + b ---------------------------

def _linear_kernel(x_ref, wt_ref, b_ref, o_ref):
    # x_ref: (TR, Din), wt_ref: (Din, Dout), b_ref: (1, Dout), o_ref: (TR, Dout)
    acc = jnp.dot(x_ref[...], wt_ref[...], preferred_element_type=jnp.float32)
    o_ref[...] = (acc + b_ref[...]).astype(o_ref.dtype)


def linear(x2d, w, b, *, row_tile=512):
    """x2d: (R, Din), w: (Dout, Din), b: (Dout,) -> (R, Dout)."""
    R, Din = x2d.shape
    Dout = w.shape[0]
    wt = w.T                      # pre-transpose once in XLA; no in-kernel XLU transpose
    b2d = b.reshape(1, Dout)
    tr = min(row_tile, R)
    grid = (pl.cdiv(R, tr),)
    return pl.pallas_call(
        _linear_kernel,
        out_shape=jax.ShapeDtypeStruct((R, Dout), x2d.dtype),
        grid_spec=pltpu.PrefetchScalarGridSpec(
            num_scalar_prefetch=0,
            grid=grid,
            in_specs=[
                pl.BlockSpec((tr, Din), lambda i: (i, 0)),
                pl.BlockSpec((Din, Dout), lambda i: (0, 0)),   # resident weights
                pl.BlockSpec((1, Dout), lambda i: (0, 0)),     # resident bias
            ],
            out_specs=pl.BlockSpec((tr, Dout), lambda i: (i, 0)),
        ),
        compiler_params=pltpu.CompilerParams(
            dimension_semantics=("parallel",),
        ),
    )(x2d, wt, b2d)


# ------------------------- per-(batch, head) attention -------------------------

def _mha_attention_kernel(*refs, scale: float, has_mask: bool):
    if has_mask:
        q_ref, k_ref, v_ref, mask_ref, o_ref, s_ref = refs
    else:
        q_ref, k_ref, v_ref, o_ref, s_ref = refs
        mask_ref = None

    q = q_ref[...]            # (Sq, d_k)
    k = k_ref[...]            # (Sk, d_k)
    v = v_ref[...]            # (Sk, d_k)

    # scores = (q @ k^T) / sqrt(d_k) -- contract on d_k, no explicit transpose.
    scores = jax.lax.dot_general(
        q, k, (((1,), (1,)), ((), ())),
        preferred_element_type=jnp.float32,
    ) * scale                                          # (Sq, Sk)

    if mask_ref is not None:
        scores = jnp.where(mask_ref[...] == 0, jnp.float32(-1e9), scores)

    # numerically-stable softmax along the key axis
    m = jnp.max(scores, axis=-1, keepdims=True)
    e = jnp.exp(scores - m)
    p = e / jnp.sum(e, axis=-1, keepdims=True)

    # TODO(synk): training-mode nn.Dropout on the attention scores is not
    # applied in-kernel (eval / identity semantics implemented).

    s_ref[...] = p.astype(s_ref.dtype)
    o_ref[...] = jnp.dot(
        p.astype(v.dtype), v, preferred_element_type=jnp.float32
    ).astype(o_ref.dtype)


# --------------------------------- the module ----------------------------------

class MultiHeadAttentionBlockPallas:
    def __init__(self, d_model: int, h: int, dropout: float, key=None) -> None:
        assert d_model % h == 0, "d_model is not divisible by h"
        self.d_model = d_model
        self.h = h
        self.d_k = d_model // h
        self.p = float(dropout)
        self.attention_scores = None

        key = jax.random.PRNGKey(0) if key is None else key
        ks = jax.random.split(key, 8)

        def init_linear(kw, kb, fan_in, fan_out):
            bound = 1.0 / math.sqrt(fan_in)
            w = jax.random.uniform(kw, (fan_out, fan_in), jnp.float32, -bound, bound)
            b = jax.random.uniform(kb, (fan_out,), jnp.float32, -bound, bound)
            return w, b

        self.w_q, self.b_q = init_linear(ks[0], ks[1], d_model, d_model)
        self.w_k, self.b_k = init_linear(ks[2], ks[3], d_model, d_model)
        self.w_v, self.b_v = init_linear(ks[4], ks[5], d_model, d_model)
        self.w_o, self.b_o = init_linear(ks[6], ks[7], d_model, d_model)

    # -- attention over (B, h, S, d_k) tensors --
    def _attention(self, Q, K, V, mask):
        B, H, Sq, d_k = Q.shape
        Sk = K.shape[2]
        scale = 1.0 / math.sqrt(d_k)
        has_mask = mask is not None
        kernel = functools.partial(
            _mha_attention_kernel, scale=scale, has_mask=has_mask
        )

        in_specs = [
            pl.BlockSpec((None, None, Sq, d_k), lambda b, h: (b, h, 0, 0)),
            pl.BlockSpec((None, None, Sk, d_k), lambda b, h: (b, h, 0, 0)),
            pl.BlockSpec((None, None, Sk, d_k), lambda b, h: (b, h, 0, 0)),
        ]
        args = [Q, K, V]
        if has_mask:
            maskb = jnp.broadcast_to(mask, (B, 1, Sq, Sk)).astype(jnp.int32)
            in_specs.append(
                pl.BlockSpec((None, None, Sq, Sk), lambda b, h: (b, 0, 0, 0))
            )
            args.append(maskb)

        out, scores = pl.pallas_call(
            kernel,
            out_shape=(
                jax.ShapeDtypeStruct((B, H, Sq, d_k), Q.dtype),
                jax.ShapeDtypeStruct((B, H, Sq, Sk), jnp.float32),
            ),
            grid_spec=pltpu.PrefetchScalarGridSpec(
                num_scalar_prefetch=0,
                grid=(B, H),
                in_specs=in_specs,
                out_specs=(
                    pl.BlockSpec((None, None, Sq, d_k), lambda b, h: (b, h, 0, 0)),
                    pl.BlockSpec((None, None, Sq, Sk), lambda b, h: (b, h, 0, 0)),
                ),
            ),
            compiler_params=pltpu.CompilerParams(
                dimension_semantics=("parallel", "parallel"),
            ),
        )(*args)
        return out, scores

    def __call__(self, q, k, v, mask=None, training: bool = False):
        B, Sq, D = q.shape
        Sk = k.shape[1]
        assert D == self.d_model

        def project(x, w, b, S):
            y = linear(x.reshape(B * S, D), w, b)
            return jnp.transpose(y.reshape(B, S, self.h, self.d_k), (0, 2, 1, 3))

        Q = project(q, self.w_q, self.b_q, Sq)   # (B, h, Sq, d_k)
        K = project(k, self.w_k, self.b_k, Sk)
        V = project(v, self.w_v, self.b_v, Sk)

        x, scores = self._attention(Q, K, V, mask)
        self.attention_scores = scores

        x = jnp.transpose(x, (0, 2, 1, 3)).reshape(B * Sq, self.h * self.d_k)
        out = linear(x, self.w_o, self.b_o).reshape(B, Sq, self.d_model)
        return out


# ------------------------------- pure-JAX reference ----------------------------

def _ref_forward(m: MultiHeadAttentionBlockPallas, q, k, v, mask):
    B, Sq, D = q.shape
    Sk = k.shape[1]
    h, d_k = m.h, m.d_k
    hp = jax.lax.Precision.HIGHEST

    def lin(x, w, b):
        return jnp.einsum("rd,od->ro", x.reshape(-1, D), w, precision=hp) + b

    Q = lin(q, m.w_q, m.b_q).reshape(B, Sq, h, d_k).transpose(0, 2, 1, 3)
    K = lin(k, m.w_k, m.b_k).reshape(B, Sk, h, d_k).transpose(0, 2, 1, 3)
    V = lin(v, m.w_v, m.b_v).reshape(B, Sk, h, d_k).transpose(0, 2, 1, 3)

    scores = jnp.einsum("bhqd,bhkd->bhqk", Q, K, precision=hp) / math.sqrt(d_k)
    if mask is not None:
        scores = jnp.where(mask == 0, -1e9, scores)
    p = jax.nn.softmax(scores, axis=-1)
    x = jnp.einsum("bhqk,bhkd->bhqd", p, V, precision=hp)
    x = x.transpose(0, 2, 1, 3).reshape(B, Sq, h * d_k)
    out = lin(x, m.w_o, m.b_o).reshape(B, Sq, D)
    return out, p


# ------------------------------------ main --------------------------------------

if __name__ == "__main__":
    B, S, D, H = 2, 8, 32, 4
    key = jax.random.PRNGKey(0)
    kq, kk, kv, kw = jax.random.split(key, 4)
    q = jax.random.normal(kq, (B, S, D), dtype=jnp.float32)
    k = jax.random.normal(kk, (B, S, D), dtype=jnp.float32)
    v = jax.random.normal(kv, (B, S, D), dtype=jnp.float32)
    mask = jnp.tril(jnp.ones((S, S), dtype=jnp.int32)).reshape(1, 1, S, S)

    module = MultiHeadAttentionBlockPallas(d_model=D, h=H, dropout=0.1, key=kw)

    out = jax.block_until_ready(module(q, k, v, mask))
    scores = jax.block_until_ready(module.attention_scores)

    ref_out, ref_scores = _ref_forward(module, q, k, v, mask)

    assert out.shape == (B, S, D)
    assert scores.shape == (B, H, S, S)
    assert jnp.allclose(out, ref_out, atol=1e-3, rtol=1e-3), "output mismatch"
    assert jnp.allclose(scores, ref_scores, atol=1e-3, rtol=1e-3), "scores mismatch"

    # Rows of the softmax'd scores must sum to 1.
    assert jnp.allclose(scores.sum(-1), jnp.ones((B, H, S)), atol=1e-4)

    print("KERNEL_OK")
</pallas_src>

<mosaic_0001>
module attributes {stable_mosaic.version = 11 : i64} {
  func.func @_linear_kernel(%arg0: i32, %arg1: memref<16x32xf32, #tpu.memory_space<vmem>>, %arg2: memref<32x32xf32, #tpu.memory_space<vmem>>, %arg3: memref<1x32xf32, #tpu.memory_space<vmem>>, %arg4: memref<16x32xf32, #tpu.memory_space<vmem>>) attributes {dimension_semantics = [#tpu.dimension_semantics<parallel>], iteration_bounds = array<i64: 1>, scalar_prefetch = 0 : i64, scratch_operands = 0 : i64, tpu.core_type = #tpu.core_type<tc>, window_params = [{transform_indices = @transform_0, window_bounds = array<i64: 16, 32>}, {pipeline_mode = #tpu.pipeline_mode<synchronous>, transform_indices = @transform_1, window_bounds = array<i64: 32, 32>}, {pipeline_mode = #tpu.pipeline_mode<synchronous>, transform_indices = @transform_2, window_bounds = array<i64: 1, 32>}, {transform_indices = @transform_3, window_bounds = array<i64: 16, 32>}]} {
    %c0 = arith.constant 0 : index
    %c0_0 = arith.constant 0 : index
    %0 = vector.load %arg1[%c0, %c0_0] : memref<16x32xf32, #tpu.memory_space<vmem>>, vector<16x32xf32>
    %c0_1 = arith.constant 0 : index
    %c0_2 = arith.constant 0 : index
    %1 = vector.load %arg2[%c0_1, %c0_2] : memref<32x32xf32, #tpu.memory_space<vmem>>, vector<32x32xf32>
    %cst = arith.constant dense<0.000000e+00> : vector<16x32xf32>
    %2 = tpu.matmul %0, %1, %cst {dimension_numbers = #tpu.dot_dimension_numbers<[1], [0], [0], [1], [0, 0, 1, 1], [], []>} : vector<16x32xf32>, vector<32x32xf32>, vector<16x32xf32> -> vector<16x32xf32>
    %c0_3 = arith.constant 0 : index
    %c0_4 = arith.constant 0 : index
    %3 = vector.load %arg3[%c0_3, %c0_4] : memref<1x32xf32, #tpu.memory_space<vmem>>, vector<1x32xf32>
    %4 = vector.broadcast %3 : vector<1x32xf32> to vector<16x32xf32>
    %5 = arith.addf %2, %4 : vector<16x32xf32>
    %c0_5 = arith.constant 0 : index
    %c0_6 = arith.constant 0 : index
    %6 = vector.load %arg4[%c0_5, %c0_6] : memref<16x32xf32, #tpu.memory_space<vmem>>, vector<16x32xf32>
    tpu.vector_store %arg4[%c0_5, %c0_6], %5 {strides = array<i32>} : memref<16x32xf32, #tpu.memory_space<vmem>>, vector<16x32xf32>,
    return
  }
  func.func @transform_0(%arg0: i32) -> (i32, i32) {
    %c0_i32 = arith.constant 0 : i32
    %c0_i32_0 = arith.constant 0 : i32
    return %arg0, %c0_i32 : i32, i32
  }
  func.func @transform_1(%arg0: i32) -> (i32, i32) {
    %c0_i32 = arith.constant 0 : i32
    %c0_i32_0 = arith.constant 0 : i32
    %c0_i32_1 = arith.constant 0 : i32
    return %c0_i32, %c0_i32_0 : i32, i32
  }
  func.func @transform_2(%arg0: i32) -> (i32, i32) {
    %c0_i32 = arith.constant 0 : i32
    %c0_i32_0 = arith.constant 0 : i32
    %c0_i32_1 = arith.constant 0 : i32
    return %c0_i32, %c0_i32_0 : i32, i32
  }
  func.func @transform_3(%arg0: i32) -> (i32, i32) {
    %c0_i32 = arith.constant 0 : i32
    %c0_i32_0 = arith.constant 0 : i32
    return %arg0, %c0_i32 : i32, i32
  }
}

</mosaic_0001>

<llo_original>
// kernel: tpu_custom_call.1
$region0: #{tpu_custom_call.1}
  #allocation0 [shape = 'u32[]', space=smem, size = 0x4, offset = 0x4, fixed_abs, tag = 'smem constant byte address 0x4 - core index']
  #allocation1 [shape = 'u32[144,128]{1,0:T(1,128)}', space=vmem, size = 0x12000, scoped, tag = 'internal scratch']
  %s0 = inlined_call_operand.hbm [shape: f32[16,32], index: 0, kind: input, shape index: {}]
  %s1 = inlined_call_operand.hbm [shape: f32[32,32], index: 1, kind: input, shape index: {}]
  %s2 = inlined_call_operand.vmem [shape: f32[1,32], index: 2, kind: input, shape index: {}]
  %s3 = inlined_call_operand.hbm [shape: f32[16,32], index: 3, kind: output, shape index: {}]
  %s4 = sld [smem:[#allocation0]]
  $region30: #{tpu_custom_call.1} parent=0
    _
  %s6 = ssub.s32 1, %s4
  %s7 = scalar_select 0, %s6, %s4
  $region1: #{tpu_custom_call.1} parent=0
    #allocation2 [shape = 'u8[8192]{0}', space=vmem, size = 0x2000, scoped, tag = 'input window, operand 0, single buffered']
    #allocation3 [shape = 's32[1]{0}', space=sflag, size = 0x4, scoped, tag = 'scoped memory for tpu_custom_call.1']
    #allocation4 [shape = 's32[1]{0}', space=sflag, size = 0x4, scoped, tag = 'scoped memory for tpu_custom_call.1']
    #allocation5 [shape = 'u8[16384]{0}', space=vmem, size = 0x4000, scoped, tag = 'input window, operand 1, single buffered']
    #allocation6 [shape = 's32[1]{0}', space=sflag, size = 0x4, scoped, tag = 'scoped memory for tpu_custom_call.1']
    #allocation7 [shape = 'u8[8192]{0}', space=vmem, size = 0x2000, scoped, tag = 'output window, operand 0, single buffered']
    %8 = vsyncpa [#allocation3], 0
    %9 = vsyncpa [#allocation6], 0
    %10 = vsyncpa [#allocation4], 0
    // Predicated region
    $region2: #{tpu_custom_call.1} parent=1 // pred_check
      _
    $region3: #{tpu_custom_call.1} parent=1 // pred_check_branch
      %12 = sbr.rel (0) target = $region5
    $region4: #{tpu_custom_call.1} parent=1 // pred_region
      %s14 = ssub.s32 256, 256
      %15 = vsyncadd [#allocation3], %s14
      %s16 = sshll.u32 [#allocation2], 4
      %s17 = int_to_ptr.vmem [resolvable:$true] %s16
      %22 = dma.hbm_to_vmem [thread:$0]  %s0, 256, %s17, [#allocation3], 128, 128, 8
    $region5: #{tpu_custom_call.1} parent=1 // pred_fallthru
      _
    // Predicated region
    $region6: #{tpu_custom_call.1} parent=1 // pred_check
      _
    $region7: #{tpu_custom_call.1} parent=1 // pred_check_branch
      %24 = sbr.rel (0) target = $region9
    $region8: #{tpu_custom_call.1} parent=1 // pred_region
      %s26 = ssub.s32 512, 512
      %27 = vsyncadd [#allocation6], %s26
      %s28 = sshll.u32 [#allocation5], 4
      %s29 = int_to_ptr.vmem [resolvable:$true] %s28
      %34 = dma.hbm_to_vmem [thread:$0]  %s1, 512, %s29, [#allocation6], 128, 128, 8
    $region9: #{tpu_custom_call.1} parent=1 // pred_fallthru
      _
    // Predicated region
    $region10: #{tpu_custom_call.1} parent=1 // pred_check
      _
    $region11: #{tpu_custom_call.1} parent=1 // pred_check_branch
      %36 = sbr.rel (0) target = $region13
    $region12: #{tpu_custom_call.1} parent=1 // pred_region
      _
    $region13: #{tpu_custom_call.1} parent=1 // pred_fallthru
      _
    // Predicated region
    $region14: #{tpu_custom_call.1} parent=1 // pred_check
      _
    $region15: #{tpu_custom_call.1} parent=1 // pred_check_branch
      %38 = sbr.rel (0) target = $region17
    $region16: #{tpu_custom_call.1} parent=1 // pred_region
      %39 = dma.done [#allocation3], 256
    $region17: #{tpu_custom_call.1} parent=1 // pred_fallthru
      _
    // Predicated region
    $region18: #{tpu_custom_call.1} parent=1 // pred_check
      _
    $region19: #{tpu_custom_call.1} parent=1 // pred_check_branch
      %41 = sbr.rel (0) target = $region21
    $region20: #{tpu_custom_call.1} parent=1 // pred_region
      %42 = dma.done [#allocation6], 512
    $region21: #{tpu_custom_call.1} parent=1 // pred_fallthru
      _
    %v43 = vld [vmem:[#allocation2] sm:$0xff]
    %v44 = vld [vmem:[#allocation2 + $0x8] sm:$0xff]
    %v45 = vld [vmem:[#allocation5] sm:$0xff]
    %v46 = vld [vmem:[#allocation5 + $0x8] sm:$0xff]
    %v47 = vld [vmem:[#allocation5 + $0x10] sm:$0xff]
    %v48 = vld [vmem:[#allocation5 + $0x18] sm:$0xff]
    %v49 = vld [vmem:[%s2] sm:$0x1]
    %v51 = vlaneseq
    %v52 = vshrl.u32 %v51, 7
    %v53 = vsub.s32 0, %v52
    %v54 = vrot.slane %v49, %v53
    %vm56 = vcmask 261120
    %v58 = vsel %vm56, %v43, 0
    %v61 = vsel %vm56, %v44, 0
    %63 = vmatprep.subr.mxu0 0.0
    %64 = vmatpush1.msra.mxu0 %v45
    %65 = vmatprep.subr.mxu0 0.0
    %66 = vmatpush1.msra.mxu0 %v46
    %67 = vmatprep.subr.mxu0 0.0
    %68 = vmatpush1.msra.mxu0 %v47
    %69 = vmatprep.subr.mxu0 0.0
    %70 = vmatpush1.msra.mxu0 %v48
    %71 = vmatprep.subr.mxu0 0.0
    %72 = vmatpush1.msra.mxu0 0.0
    %73 = vmatprep.subr.mxu0 0.0
    %74 = vmatpush1.msra.mxu0 0.0
    %75 = vmatprep.subr.mxu0 0.0
    %76 = vmatpush1.msra.mxu0 0.0
    %77 = vmatprep.subr.mxu0 0.0
    %78 = vmatpush1.msra.mxu0 0.0
    %79 = vmatprep.subr.mxu0 0.0
    %80 = vmatpush1.msra.mxu0 0.0
    %81 = vmatprep.subr.mxu0 0.0
    %82 = vmatpush1.msra.mxu0 0.0
    %83 = vmatprep.subr.mxu0 0.0
    %84 = vmatpush1.msra.mxu0 0.0
    %85 = vmatprep.subr.mxu0 0.0
    %86 = vmatpush1.msra.mxu0 0.0
    %87 = vmatprep.subr.mxu0 0.0
    %88 = vmatpush1.msra.mxu0 0.0
    %89 = vmatprep.subr.mxu0 0.0
    %90 = vmatpush1.msra.mxu0 0.0
    %91 = vmatprep.subr.mxu0 0.0
    %92 = vmatpush1.msra.mxu0 0.0
    %93 = vmatprep.subr.mxu0 0.0
    %94 = vmatpush1.msra.mxu0 0.0
    %95 = vmatprep.subr.mxu0 0.0
    %96 = vmatpush1.msra.mxu0 0.0
    %97 = vmatprep.subr.mxu0 0.0
    %98 = vmatpush1.msra.mxu0 0.0
    %99 = vmatprep.subr.mxu0 0.0
    %100 = vmatpush1.msra.mxu0 0.0
    %101 = vmatprep.subr.mxu0 0.0
    %102 = vmatpush1.msra.mxu0 0.0
    %103 = vmatprep.subr.mxu0 0.0
    %104 = vmatpush1.msra.mxu0 0.0
    %105 = vmatprep.subr.mxu0 0.0
    %106 = vmatpush1.msra.mxu0 0.0
    %107 = vmatprep.subr.mxu0 0.0
    %108 = vmatpush1.msra.mxu0 0.0
    %109 = vmatprep.subr.mxu0 0.0
    %110 = vmatpush1.msra.mxu0 0.0
    %111 = vmatprep.subr.mxu0 0.0
    %112 = vmatpush1.msra.mxu0 0.0
    %113 = vmatprep.subr.mxu0 0.0
    %114 = vmatpush1.msra.mxu0 0.0
    %115 = vmatprep.subr.mxu0 0.0
    %116 = vmatpush1.msra.mxu0 0.0
    %117 = vmatprep.subr.mxu0 0.0
    %118 = vmatpush1.msra.mxu0 0.0
    %119 = vmatprep.subr.mxu0 0.0
    %120 = vmatpush1.msra.mxu0 0.0
    %121 = vmatprep.subr.mxu0 0.0
    %122 = vmatpush1.msra.mxu0 0.0
    %123 = vmatprep.subr.mxu0 0.0
    %124 = vmatpush1.msra.mxu0 0.0
    %125 = vmatprep.subr.mxu0 0.0
    %126 = vmatpush1.msra.mxu0 0.0
    %127 = vmatprep.mubr.f32.mxu0 0.0
    %128 = vmatmul.mubr.f32.gmra.mrb[0].mxu0 %v58
    %v129 = vpop.f32.mrb[0].mxu0
    %v130 = vadd.f32 %v54, %v129
    %v131 = vpop.f32.mrb[0].mxu0
    %132 = vmatprep.mubr.f32.mxu0 0.0
    %133 = vmatmul.mubr.f32.gmra.mrb[0].mxu0 %v61
    %v134 = vpop.f32.mrb[0].mxu0
    %v135 = vadd.f32 %v54, %v134
    %v136 = vpop.f32.mrb[0].mxu0
    %137 = vdwg.mxu0
    %138 = vst.msk [vmem:[#allocation7] sm:$0xff] %vm56, %v130
    %139 = vst.msk [vmem:[#allocation7 + $0x8] sm:$0xff] %vm56, %v135
    // Predicated region
    $region22: #{tpu_custom_call.1} parent=1 // pred_check
      _
    $region23: #{tpu_custom_call.1} parent=1 // pred_check_branch
      %141 = sbr.rel (0) target = $region25
    $region24: #{tpu_custom_call.1} parent=1 // pred_region
      %s143 = ssub.s32 256, 256
      %144 = vsyncadd [#allocation4], %s143
      %s145 = sshll.u32 [#allocation7], 4
      %s146 = int_to_ptr.vmem [resolvable:$true] %s145
      %151 = dma.vmem_to_hbm [thread:$0]  %s146, 256, %s3, [#allocation4], 128, 128, 8
    $region25: #{tpu_custom_call.1} parent=1 // pred_fallthru
      _
    // Predicated region
    $region26: #{tpu_custom_call.1} parent=1 // pred_check
      _
    $region27: #{tpu_custom_call.1} parent=1 // pred_check_branch
      %153 = sbr.rel (0) target = $region29
    $region28: #{tpu_custom_call.1} parent=1 // pred_region
      %154 = dma.done [#allocation4], 256
    $region29: #{tpu_custom_call.1} parent=1 // pred_fallthru
      _
    %155 = vsyncpa [#allocation3], 1
    %156 = vsyncpa [#allocation6], 1
    %157 = vsyncpa [#allocation4], 1

</llo_original>
